<compile_context>
chip_gen: v5e
topology: v5e:2x2
jax: 0.10.0
libtpu: 0.0.40
codegen_flags: <defaults>
</compile_context>

<pallas_src>
import jax
import jax.numpy as jnp
from jax import lax
from jax.experimental import pallas as pl
from jax.experimental.pallas import tpu as pltpu


_PAD_VALUE = 1.0e4                        # sentinel candidate value for padded rows
_RESIDENT_COL_BYTES = 1 * 1024 * 1024     # keep column operand VMEM-resident below this
_TILE_INPUT_BUDGET = 10 * 1024 * 1024     # target for double-buffered candidate tiles


def _snn_kernel(xr_ref, xcT_ref, sqr_ref, sqc_ref, labi_ref, labj_ref,
                r_ref, valid_ref, num_acc, den_acc):
    tr = xr_ref.shape[0]
    tc = xcT_ref.shape[1]
    ri = pl.program_id(0)
    ci = pl.program_id(1)

    @pl.when(ci == 0)
    def _():
        num_acc[...] = jnp.zeros_like(num_acc)
        den_acc[...] = jnp.zeros_like(den_acc)

    # Plain (TR, C) x (C, TC) contraction on the MXU.  The row operand is
    # pre-scaled by -2*coef in the wrapper, so gram == -2*coef*<x_i, x_j>.
    gram = jnp.dot(xr_ref[...], xcT_ref[...], preferred_element_type=jnp.float32)

    # exp argument: coef*(||x_i||^2 + ||x_j||^2 - 2<x_i,x_j>); coef (<0) is
    # already folded into the hoisted norms, so the clamp at non-negative
    # squared distance becomes a min with 0.
    arg = jnp.minimum(sqr_ref[...] + sqc_ref[...] + gram, 0.0)
    e = jnp.exp(arg)                                           # (TR, TC) f32

    den_acc[...] += jnp.sum(e, axis=1, keepdims=True)

    label_match = labi_ref[...] == labj_ref[...]               # (TR, TC) bool
    row0 = ri * tr
    col0 = ci * tc
    touches_diag = (row0 < col0 + tc) & (col0 < row0 + tr)

    @pl.when(touches_diag)
    def _():
        # Self-pairs live in this tile: exclude them from the numerator.
        row_gid = row0 + lax.broadcasted_iota(jnp.int32, (tr, tc), 0)
        col_gid = col0 + lax.broadcasted_iota(jnp.int32, (tr, tc), 1)
        pos = label_match & (row_gid != col_gid)
        num_acc[...] += jnp.sum(jnp.where(pos, e, 0.0), axis=1, keepdims=True)

    @pl.when(jnp.logical_not(touches_diag))
    def _():
        # No self-pairs possible here: label equality alone is the mask.
        num_acc[...] += jnp.sum(jnp.where(label_match, e, 0.0),
                                axis=1, keepdims=True)

    @pl.when(ci == pl.num_programs(1) - 1)
    def _():
        num = num_acc[...]
        den = den_acc[...]
        # Rows with no positive pair (including sentinel-padded rows) are
        # dropped from the mean, like the torch .nonzero() filtering.
        valid = num > 0.0
        safe_num = jnp.where(valid, num, 1.0)
        safe_den = jnp.where(valid, den, 1.0)
        r_ref[...] = jnp.where(valid,
                               jnp.log(safe_num) - jnp.log(safe_den), 0.0)
        valid_ref[...] = valid.astype(jnp.float32)


def _round_up(x, m):
    return ((x + m - 1) // m) * m


def _largest_divisor(n, preferred, fallbacks):
    for t in (preferred,) + tuple(fallbacks):
        if 0 < t <= n and n % t == 0:
            return t
    return n


def _choose_tiles(b, embed_dim, itemsize, row_tile, col_tile):
    """Return (padded_b, row_tile, col_tile) honoring TPU layout constraints."""
    if b <= 128:
        return b, b, b                      # single tile, no padding

    bp = _round_up(b, 128)                  # pad to a lane multiple only

    # Shrink tiles for large embed_dim so double-buffered candidate tiles stay
    # well inside the scoped-VMEM budget (v5e default is only 16 MiB).
    tc_pref = col_tile
    while (tc_pref > 128 and
           2 * (row_tile + tc_pref) * embed_dim * itemsize > _TILE_INPUT_BUDGET):
        tc_pref //= 2
    tr_pref = row_tile
    while (tr_pref > 64 and
           2 * (tr_pref + tc_pref) * embed_dim * itemsize > _TILE_INPUT_BUDGET):
        tr_pref //= 2

    # Prefer >= 2 row tiles so the "parallel" axis can feed both v7x cores.
    tr_pref = min(tr_pref, bp // 2)
    # Layout constraints: row tile multiple of 8 (sublane), col tile of 128.
    tr_pref = max(8, (tr_pref // 8) * 8)
    tc_pref = max(128, (tc_pref // 128) * 128)

    tr = _largest_divisor(bp, tr_pref, (256, 128, 64, 32, 16, 8))
    tc = _largest_divisor(bp, tc_pref, (512, 256, 128))

    # If the whole (transposed) column operand is small, use one resident
    # column tile: constant block index -> DMA'd from HBM exactly once.
    if (bp * embed_dim * itemsize <= _RESIDENT_COL_BYTES
            and 6 * tr * bp * 4 <= _TILE_INPUT_BUDGET):
        tc = bp
    return bp, tr, tc


def soft_nearest_neighbors_loss(candidates, labels, temperature=0.1,
                                row_tile=256, col_tile=512):
    """candidates: (B, C), labels: (B,) int -> scalar float32 loss."""
    if candidates.shape[0] != labels.shape[0]:
        raise ValueError(
            f"There are {candidates.shape[0]} candidates, but only "
            f"{labels.shape[0]} labels")
    b, embed_dim = candidates.shape
    itemsize = jnp.dtype(candidates.dtype).itemsize
    scale = embed_dim ** (-0.5)
    coef = float(-scale / temperature)            # negative

    bp, tr, tc = _choose_tiles(b, embed_dim, itemsize, row_tile, col_tile)
    npad = bp - b

    labels_i32 = labels.astype(jnp.int32)
    if npad:
        # Sentinel padding (no runtime masks in the kernel):
        #  * padded candidate rows get a large constant, so exp(coef*dist)
        #    underflows to exactly 0 for every real<->padded pair;
        #  * padded labels get distinct sentinels, so padded rows never form
        #    positive pairs with each other -> num == 0 -> dropped at finalize.
        cand_p = jnp.pad(candidates, ((0, npad), (0, 0)),
                         constant_values=_PAD_VALUE)
        pad_lab = jnp.iinfo(jnp.int32).min + jnp.arange(npad, dtype=jnp.int32)
        lab_p = jnp.concatenate([labels_i32, pad_lab])
    else:
        cand_p = candidates
        lab_p = labels_i32

    # Hoisted per-row squared norms with coef folded in: O(B*C) once here
    # instead of O(B^2*C/TR) recomputation inside the kernel.
    xf = cand_p.astype(jnp.float32)
    sqn = coef * jnp.sum(xf * xf, axis=1)
    sq_row = sqn.reshape(bp, 1)
    sq_col = sqn.reshape(1, bp)

    # Row operand pre-scaled by -2*coef (positive); column operand
    # pre-transposed so the kernel runs a plain (TR,C)x(C,TC) contraction.
    xr = cand_p * (-2.0 * coef)
    xcT = jnp.transpose(cand_p)

    lab_i = lab_p.reshape(bp, 1)
    lab_j = lab_p.reshape(1, bp)

    n_row_tiles = bp // tr
    n_col_tiles = bp // tc

    # Advisory cost estimate (column operand is re-streamed once per row tile
    # unless it is VMEM-resident).
    col_passes = 1 if tc == bp else n_row_tiles
    cost = pl.CostEstimate(
        flops=2 * bp * bp * embed_dim,
        transcendentals=bp * bp,
        bytes_accessed=int(bp * embed_dim * itemsize * (1 + col_passes)
                           + 3 * bp * 4 * (1 + col_passes) + 2 * bp * 4))

    # Scoped-VMEM budget from the actual footprint (stay <= 48 MiB for v7x).
    est_bytes = (2 * (tr + tc) * embed_dim * itemsize   # double-buffered tiles
                 + 8 * tr * tc * 4                      # live (TR,TC) f32 temps
                 + 4 * (tr + tc) * 8                    # norms + labels
                 + 16 * tr * 4)                         # outputs + accumulators
    vmem_limit = int(min(48 * 1024 * 1024,
                         max(32 * 1024 * 1024, int(1.5 * est_bytes))))

    r, valid = pl.pallas_call(
        _snn_kernel,
        out_shape=(jax.ShapeDtypeStruct((bp, 1), jnp.float32),
                   jax.ShapeDtypeStruct((bp, 1), jnp.float32)),
        grid_spec=pltpu.PrefetchScalarGridSpec(
            num_scalar_prefetch=0,
            grid=(n_row_tiles, n_col_tiles),
            in_specs=[
                pl.BlockSpec((tr, embed_dim), lambda ri, ci: (ri, 0)),  # rows (pre-scaled)
                pl.BlockSpec((embed_dim, tc), lambda ri, ci: (0, ci)),  # cols (pre-transposed)
                pl.BlockSpec((tr, 1), lambda ri, ci: (ri, 0)),          # coef*||x_i||^2
                pl.BlockSpec((1, tc), lambda ri, ci: (0, ci)),          # coef*||x_j||^2
                pl.BlockSpec((tr, 1), lambda ri, ci: (ri, 0)),          # labels_i
                pl.BlockSpec((1, tc), lambda ri, ci: (0, ci)),          # labels_j
            ],
            out_specs=[
                pl.BlockSpec((tr, 1), lambda ri, ci: (ri, 0)),
                pl.BlockSpec((tr, 1), lambda ri, ci: (ri, 0)),
            ],
            scratch_shapes=[
                pltpu.VMEM((tr, 1), jnp.float32),   # numerator accumulator
                pltpu.VMEM((tr, 1), jnp.float32),   # denominator accumulator
            ]),
        compiler_params=pltpu.CompilerParams(
            dimension_semantics=("parallel", "arbitrary"),
            vmem_limit_bytes=vmem_limit),
        cost_estimate=cost,
    )(xr, xcT, sq_row, sq_col, lab_i, lab_j)

    count = jnp.sum(valid)
    # count == 0 (no positive pairs anywhere) -> NaN, same as the reference.
    return -jnp.sum(r) / count


def _reference_loss(candidates, labels, temperature=0.1):
    """Pure-JAX reference mirroring the PyTorch forward (full B x B matrix)."""
    b, embed_dim = candidates.shape
    scale = embed_dim ** (-0.5)
    x = candidates.astype(jnp.float32)
    sq = jnp.sum(x * x, axis=1)
    dist = jnp.maximum(sq[:, None] + sq[None, :] - 2.0 * jnp.dot(x, x.T), 0.0)
    e = jnp.exp(-dist * scale / temperature)
    mask = (labels[:, None] == labels[None, :]).astype(jnp.float32)
    mask = mask * (1.0 - jnp.eye(b, dtype=jnp.float32))
    num = jnp.sum(e * mask, axis=1)
    den = jnp.sum(e, axis=1)
    valid = num > 0.0
    r = jnp.where(valid, jnp.log(jnp.where(valid, num, 1.0) / den), 0.0)
    return -jnp.sum(r) / jnp.sum(valid.astype(jnp.float32))


if __name__ == "__main__":
    key = jax.random.PRNGKey(0)
    k = jax.random.split(key, 6)

    # Tolerances: the MXU's default matmul precision for f32 operands can
    # round through bf16 passes, so kernel and pure-JAX reference may differ
    # at the ~1e-3 level on log-ratios; structural bugs would be >> 0.05.
    RTOL, ATOL = 2e-3, 5e-3

    # 1) Small batch: single-tile path (B <= 128).
    cand_s = jax.random.normal(k[0], (8, 32), dtype=jnp.float32)
    lab_s = jax.random.randint(k[1], (8,), 0, 3, dtype=jnp.int32)
    loss_s = jax.block_until_ready(
        soft_nearest_neighbors_loss(cand_s, lab_s, temperature=2.0))
    ref_s = _reference_loss(cand_s, lab_s, temperature=2.0)
    assert jnp.isfinite(loss_s), "small-case loss is not finite"
    assert jnp.allclose(loss_s, ref_s, rtol=RTOL, atol=ATOL), (loss_s, ref_s)

    # 2) Medium batch: padding 200 -> 256 (sentinel rows), two row tiles,
    #    VMEM-resident column operand (single column tile).
    cand_m = jax.random.normal(k[2], (200, 32), dtype=jnp.float32)
    lab_m = jax.random.randint(k[3], (200,), 0, 4, dtype=jnp.int32)
    loss_m = jax.block_until_ready(
        soft_nearest_neighbors_loss(cand_m, lab_m, temperature=2.0))
    ref_m = _reference_loss(cand_m, lab_m, temperature=2.0)
    assert jnp.isfinite(loss_m), "medium-case loss is not finite"
    assert jnp.allclose(loss_m, ref_m, rtol=RTOL, atol=ATOL), (loss_m, ref_m)

    # 3) Larger embed_dim: multi-tile reduction (column) axis, so the
    #    cross-tile accumulation and the diagonal gating (both the diagonal
    #    and off-diagonal branches) are exercised, plus sentinel padding.
    cand_l = jax.random.normal(k[4], (300, 768), dtype=jnp.float32)
    lab_l = jax.random.randint(k[5], (300,), 0, 4, dtype=jnp.int32)
    loss_l = jax.block_until_ready(
        soft_nearest_neighbors_loss(cand_l, lab_l, temperature=16.0))
    ref_l = _reference_loss(cand_l, lab_l, temperature=16.0)
    assert jnp.isfinite(loss_l), "tiled-case loss is not finite"
    assert jnp.allclose(loss_l, ref_l, rtol=RTOL, atol=ATOL), (loss_l, ref_l)

    print("KERNEL_OK")
</pallas_src>

<mosaic_0001>
module attributes {stable_mosaic.version = 11 : i64} {
  func.func @_snn_kernel(%arg0: i32, %arg1: i32, %arg2: memref<8x32xf32, #tpu.memory_space<vmem>>, %arg3: memref<32x8xf32, #tpu.memory_space<vmem>>, %arg4: memref<8x1xf32, #tpu.memory_space<vmem>>, %arg5: memref<1x8xf32, #tpu.memory_space<vmem>>, %arg6: memref<8x1xi32, #tpu.memory_space<vmem>>, %arg7: memref<1x8xi32, #tpu.memory_space<vmem>>, %arg8: memref<8x1xf32, #tpu.memory_space<vmem>>, %arg9: memref<8x1xf32, #tpu.memory_space<vmem>>, %arg10: memref<8x1xf32, #tpu.memory_space<vmem>>, %arg11: memref<8x1xf32, #tpu.memory_space<vmem>>) attributes {dimension_semantics = [#tpu.dimension_semantics<parallel>, #tpu.dimension_semantics<arbitrary>], iteration_bounds = array<i64: 1, 1>, scalar_prefetch = 0 : i64, scratch_operands = 2 : i64, tpu.core_type = #tpu.core_type<tc>, window_params = [{transform_indices = @transform_0, window_bounds = array<i64: 8, 32>}, {transform_indices = @transform_1, window_bounds = array<i64: 32, 8>}, {transform_indices = @transform_2, window_bounds = array<i64: 8, 1>}, {transform_indices = @transform_3, window_bounds = array<i64: 1, 8>}, {transform_indices = @transform_4, window_bounds = array<i64: 8, 1>}, {transform_indices = @transform_5, window_bounds = array<i64: 1, 8>}, {transform_indices = @transform_6, window_bounds = array<i64: 8, 1>}, {transform_indices = @transform_7, window_bounds = array<i64: 8, 1>}]} {
    %c0_i32 = arith.constant 0 : i32
    %0 = arith.cmpi eq, %arg1, %c0_i32 : i32
    %1 = arith.extui %0 : i1 to i32
    %c0_i32_0 = arith.constant 0 : i32
    %2 = arith.cmpi ne, %1, %c0_i32_0 : i32
    scf.if %2 {
      %cst_25 = arith.constant 0.000000e+00 : f32
      %40 = vector.broadcast %cst_25 : f32 to vector<8x1xf32>
      %c0_26 = arith.constant 0 : index
      %c0_27 = arith.constant 0 : index
      %41 = vector.load %arg10[%c0_26, %c0_27] : memref<8x1xf32, #tpu.memory_space<vmem>>, vector<8x1xf32>
      tpu.vector_store %arg10[%c0_26, %c0_27], %40 {strides = array<i32>} : memref<8x1xf32, #tpu.memory_space<vmem>>, vector<8x1xf32>,
      %cst_28 = arith.constant 0.000000e+00 : f32
      %42 = vector.broadcast %cst_28 : f32 to vector<8x1xf32>
      %c0_29 = arith.constant 0 : index
      %c0_30 = arith.constant 0 : index
      %43 = vector.load %arg11[%c0_29, %c0_30] : memref<8x1xf32, #tpu.memory_space<vmem>>, vector<8x1xf32>
      tpu.vector_store %arg11[%c0_29, %c0_30], %42 {strides = array<i32>} : memref<8x1xf32, #tpu.memory_space<vmem>>, vector<8x1xf32>,
    } else {
    }
    %c0 = arith.constant 0 : index
    %c0_1 = arith.constant 0 : index
    %3 = vector.load %arg2[%c0, %c0_1] : memref<8x32xf32, #tpu.memory_space<vmem>>, vector<8x32xf32>
    %c0_2 = arith.constant 0 : index
    %c0_3 = arith.constant 0 : index
    %4 = vector.load %arg3[%c0_2, %c0_3] : memref<32x8xf32, #tpu.memory_space<vmem>>, vector<32x8xf32>
    %cst = arith.constant dense<0.000000e+00> : vector<8x8xf32>
    %5 = tpu.matmul %3, %4, %cst {dimension_numbers = #tpu.dot_dimension_numbers<[1], [0], [0], [1], [0, 0, 1, 1], [], []>} : vector<8x32xf32>, vector<32x8xf32>, vector<8x8xf32> -> vector<8x8xf32>
    %c0_4 = arith.constant 0 : index
    %c0_5 = arith.constant 0 : index
    %6 = vector.load %arg4[%c0_4, %c0_5] : memref<8x1xf32, #tpu.memory_space<vmem>>, vector<8x1xf32>
    %c0_6 = arith.constant 0 : index
    %c0_7 = arith.constant 0 : index
    %7 = vector.load %arg5[%c0_6, %c0_7] : memref<1x8xf32, #tpu.memory_space<vmem>>, vector<1x8xf32>
    %8 = vector.broadcast %6 : vector<8x1xf32> to vector<8x8xf32>
    %9 = vector.broadcast %7 : vector<1x8xf32> to vector<8x8xf32>
    %10 = arith.addf %8, %9 : vector<8x8xf32>
    %11 = arith.addf %10, %5 : vector<8x8xf32>
    %cst_8 = arith.constant 0.000000e+00 : f32
    %12 = vector.broadcast %cst_8 : f32 to vector<8x8xf32>
    %13 = arith.minimumf %11, %12 : vector<8x8xf32>
    %14 = math.exp %13 : vector<8x8xf32>
    %c0_9 = arith.constant 0 : index
    %c0_10 = arith.constant 0 : index
    %15 = vector.load %arg11[%c0_9, %c0_10] : memref<8x1xf32, #tpu.memory_space<vmem>>, vector<8x1xf32>
    %cst_11 = arith.constant dense<0.000000e+00> : vector<8xf32>
    %16 = vector.multi_reduction <add>, %14, %cst_11 [1] : vector<8x8xf32> to vector<8xf32>
    %17 = vector.shape_cast %16 : vector<8xf32> to vector<8x1xf32>
    %18 = arith.addf %15, %17 : vector<8x1xf32>
    %c0_12 = arith.constant 0 : index
    %c0_13 = arith.constant 0 : index
    %19 = vector.load %arg11[%c0_12, %c0_13] : memref<8x1xf32, #tpu.memory_space<vmem>>, vector<8x1xf32>
    tpu.vector_store %arg11[%c0_12, %c0_13], %18 {strides = array<i32>} : memref<8x1xf32, #tpu.memory_space<vmem>>, vector<8x1xf32>,
    %c0_14 = arith.constant 0 : index
    %c0_15 = arith.constant 0 : index
    %20 = vector.load %arg6[%c0_14, %c0_15] : memref<8x1xi32, #tpu.memory_space<vmem>>, vector<8x1xi32>
    %c0_16 = arith.constant 0 : index
    %c0_17 = arith.constant 0 : index
    %21 = vector.load %arg7[%c0_16, %c0_17] : memref<1x8xi32, #tpu.memory_space<vmem>>, vector<1x8xi32>
    %22 = vector.broadcast %20 : vector<8x1xi32> to vector<8x8xi32>
    %23 = vector.broadcast %21 : vector<1x8xi32> to vector<8x8xi32>
    %24 = arith.cmpi eq, %22, %23 : vector<8x8xi32>
    %c8_i32 = arith.constant 8 : i32
    %25 = arith.muli %arg0, %c8_i32 : i32
    %c8_i32_18 = arith.constant 8 : i32
    %26 = arith.muli %arg1, %c8_i32_18 : i32
    %c8_i32_19 = arith.constant 8 : i32
    %27 = arith.addi %26, %c8_i32_19 : i32
    %28 = arith.cmpi slt, %25, %27 : i32
    %c8_i32_20 = arith.constant 8 : i32
    %29 = arith.addi %25, %c8_i32_20 : i32
    %30 = arith.cmpi slt, %26, %29 : i32
    %31 = arith.andi %28, %30 : i1
    %32 = arith.extui %31 : i1 to i32
    %c0_i32_21 = arith.constant 0 : i32
    %33 = arith.cmpi ne, %32, %c0_i32_21 : i32
    scf.if %33 {
      %40 = tpu.iota {dimensions = array<i32: 0>} : vector<8x8xi32>
      %41 = vector.broadcast %25 : i32 to vector<8x8xi32>
      %42 = arith.addi %41, %40 : vector<8x8xi32>
      %43 = tpu.iota {dimensions = array<i32: 1>} : vector<8x8xi32>
      %44 = vector.broadcast %26 : i32 to vector<8x8xi32>
      %45 = arith.addi %44, %43 : vector<8x8xi32>
      %46 = arith.cmpi ne, %42, %45 : vector<8x8xi32>
      %47 = arith.andi %24, %46 : vector<8x8xi1>
      %c0_25 = arith.constant 0 : index
      %c0_26 = arith.constant 0 : index
      %48 = vector.load %arg10[%c0_25, %c0_26] : memref<8x1xf32, #tpu.memory_space<vmem>>, vector<8x1xf32>
      %cst_27 = arith.constant 0.000000e+00 : f32
      %49 = vector.broadcast %cst_27 : f32 to vector<8x8xf32>
      %50 = arith.select %47, %14, %49 : vector<8x8xi1>, vector<8x8xf32>
      %cst_28 = arith.constant dense<0.000000e+00> : vector<8xf32>
      %51 = vector.multi_reduction <add>, %50, %cst_28 [1] : vector<8x8xf32> to vector<8xf32>
      %52 = vector.shape_cast %51 : vector<8xf32> to vector<8x1xf32>
      %53 = arith.addf %48, %52 : vector<8x1xf32>
      %c0_29 = arith.constant 0 : index
      %c0_30 = arith.constant 0 : index
      %54 = vector.load %arg10[%c0_29, %c0_30] : memref<8x1xf32, #tpu.memory_space<vmem>>, vector<8x1xf32>
      tpu.vector_store %arg10[%c0_29, %c0_30], %53 {strides = array<i32>} : memref<8x1xf32, #tpu.memory_space<vmem>>, vector<8x1xf32>,
    } else {
    }
    %true = arith.constant true
    %34 = arith.xori %31, %true : i1
    %35 = arith.extui %34 : i1 to i32
    %c0_i32_22 = arith.constant 0 : i32
    %36 = arith.cmpi ne, %35, %c0_i32_22 : i32
    scf.if %36 {
      %c0_25 = arith.constant 0 : index
      %c0_26 = arith.constant 0 : index
      %40 = vector.load %arg10[%c0_25, %c0_26] : memref<8x1xf32, #tpu.memory_space<vmem>>, vector<8x1xf32>
      %cst_27 = arith.constant 0.000000e+00 : f32
      %41 = vector.broadcast %cst_27 : f32 to vector<8x8xf32>
      %42 = arith.select %24, %14, %41 : vector<8x8xi1>, vector<8x8xf32>
      %cst_28 = arith.constant dense<0.000000e+00> : vector<8xf32>
      %43 = vector.multi_reduction <add>, %42, %cst_28 [1] : vector<8x8xf32> to vector<8xf32>
      %44 = vector.shape_cast %43 : vector<8xf32> to vector<8x1xf32>
      %45 = arith.addf %40, %44 : vector<8x1xf32>
      %c0_29 = arith.constant 0 : index
      %c0_30 = arith.constant 0 : index
      %46 = vector.load %arg10[%c0_29, %c0_30] : memref<8x1xf32, #tpu.memory_space<vmem>>, vector<8x1xf32>
      tpu.vector_store %arg10[%c0_29, %c0_30], %45 {strides = array<i32>} : memref<8x1xf32, #tpu.memory_space<vmem>>, vector<8x1xf32>,
    } else {
    }
    %c0_i32_23 = arith.constant 0 : i32
    %37 = arith.cmpi eq, %arg1, %c0_i32_23 : i32
    %38 = arith.extui %37 : i1 to i32
    %c0_i32_24 = arith.constant 0 : i32
    %39 = arith.cmpi ne, %38, %c0_i32_24 : i32
    scf.if %39 {
      %c0_25 = arith.constant 0 : index
      %c0_26 = arith.constant 0 : index
      %40 = vector.load %arg10[%c0_25, %c0_26] : memref<8x1xf32, #tpu.memory_space<vmem>>, vector<8x1xf32>
      %c0_27 = arith.constant 0 : index
      %c0_28 = arith.constant 0 : index
      %41 = vector.load %arg11[%c0_27, %c0_28] : memref<8x1xf32, #tpu.memory_space<vmem>>, vector<8x1xf32>
      %cst_29 = arith.constant 0.000000e+00 : f32
      %42 = vector.broadcast %cst_29 : f32 to vector<8x1xf32>
      %43 = arith.cmpf ogt, %40, %42 : vector<8x1xf32>
      %cst_30 = arith.constant 1.000000e+00 : f32
      %44 = vector.broadcast %cst_30 : f32 to vector<8x1xf32>
      %45 = arith.select %43, %40, %44 : vector<8x1xi1>, vector<8x1xf32>
      %cst_31 = arith.constant 1.000000e+00 : f32
      %46 = vector.broadcast %cst_31 : f32 to vector<8x1xf32>
      %47 = arith.select %43, %41, %46 : vector<8x1xi1>, vector<8x1xf32>
      %48 = math.log %45 : vector<8x1xf32>
      %49 = math.log %47 : vector<8x1xf32>
      %50 = arith.subf %48, %49 : vector<8x1xf32>
      %cst_32 = arith.constant 0.000000e+00 : f32
      %51 = vector.broadcast %cst_32 : f32 to vector<8x1xf32>
      %52 = arith.select %43, %50, %51 : vector<8x1xi1>, vector<8x1xf32>
      %c0_33 = arith.constant 0 : index
      %c0_34 = arith.constant 0 : index
      %53 = vector.load %arg8[%c0_33, %c0_34] : memref<8x1xf32, #tpu.memory_space<vmem>>, vector<8x1xf32>
      tpu.vector_store %arg8[%c0_33, %c0_34], %52 {strides = array<i32>} : memref<8x1xf32, #tpu.memory_space<vmem>>, vector<8x1xf32>,
      %54 = arith.extui %43 : vector<8x1xi1> to vector<8x1xi32>
      %55 = arith.sitofp %54 : vector<8x1xi32> to vector<8x1xf32>
      %c0_35 = arith.constant 0 : index
      %c0_36 = arith.constant 0 : index
      %56 = vector.load %arg9[%c0_35, %c0_36] : memref<8x1xf32, #tpu.memory_space<vmem>>, vector<8x1xf32>
      tpu.vector_store %arg9[%c0_35, %c0_36], %55 {strides = array<i32>} : memref<8x1xf32, #tpu.memory_space<vmem>>, vector<8x1xf32>,
    } else {
    }
    return
  }
  func.func @transform_0(%arg0: i32, %arg1: i32) -> (i32, i32) {
    %c0_i32 = arith.constant 0 : i32
    %c0_i32_0 = arith.constant 0 : i32
    return %arg0, %c0_i32 : i32, i32
  }
  func.func @transform_1(%arg0: i32, %arg1: i32) -> (i32, i32) {
    %c0_i32 = arith.constant 0 : i32
    %c0_i32_0 = arith.constant 0 : i32
    return %c0_i32, %arg1 : i32, i32
  }
  func.func @transform_2(%arg0: i32, %arg1: i32) -> (i32, i32) {
    %c0_i32 = arith.constant 0 : i32
    %c0_i32_0 = arith.constant 0 : i32
    return %arg0, %c0_i32 : i32, i32
  }
  func.func @transform_3(%arg0: i32, %arg1: i32) -> (i32, i32) {
    %c0_i32 = arith.constant 0 : i32
    %c0_i32_0 = arith.constant 0 : i32
    return %c0_i32, %arg1 : i32, i32
  }
  func.func @transform_4(%arg0: i32, %arg1: i32) -> (i32, i32) {
    %c0_i32 = arith.constant 0 : i32
    %c0_i32_0 = arith.constant 0 : i32
    return %arg0, %c0_i32 : i32, i32
  }
  func.func @transform_5(%arg0: i32, %arg1: i32) -> (i32, i32) {
    %c0_i32 = arith.constant 0 : i32
    %c0_i32_0 = arith.constant 0 : i32
    return %c0_i32, %arg1 : i32, i32
  }
  func.func @transform_6(%arg0: i32, %arg1: i32) -> (i32, i32) {
    %c0_i32 = arith.constant 0 : i32
    %c0_i32_0 = arith.constant 0 : i32
    return %arg0, %c0_i32 : i32, i32
  }
  func.func @transform_7(%arg0: i32, %arg1: i32) -> (i32, i32) {
    %c0_i32 = arith.constant 0 : i32
    %c0_i32_0 = arith.constant 0 : i32
    return %arg0, %c0_i32 : i32, i32
  }
}

</mosaic_0001>

<llo_original>
// kernel: tpu_custom_call.1
$region0: #{tpu_custom_call.1}
  #allocation0 [shape = 'u32[]', space=smem, size = 0x4, offset = 0x4, fixed_abs, tag = 'smem constant byte address 0x4 - core index']
  #allocation1 [shape = 'u32[72,128]{1,0:T(1,128)}', space=vmem, size = 0x9000, scoped, tag = 'internal scratch']
  #allocation2 [shape = 'f32[8,1]{1,0:T(8,128)}', space=vmem, size = 0x1000, scoped, tag = 'scratch operand']
  #allocation3 [shape = 'f32[8,1]{1,0:T(8,128)}', space=vmem, size = 0x1000, scoped, tag = 'scratch operand']
  %s0 = inlined_call_operand.vmem [shape: f32[8,32], index: 0, kind: input, shape index: {}]
  %s1 = inlined_call_operand.vmem [shape: f32[32,8], index: 1, kind: input, shape index: {}]
  %s2 = inlined_call_operand.vmem [shape: f32[8,1], index: 2, kind: input, shape index: {}]
  %s3 = inlined_call_operand.vmem [shape: f32[1,8], index: 3, kind: input, shape index: {}]
  %s4 = inlined_call_operand.vmem [shape: s32[8,1], index: 4, kind: input, shape index: {}]
  %s5 = inlined_call_operand.vmem [shape: s32[1,8], index: 5, kind: input, shape index: {}]
  %s6 = inlined_call_operand.vmem [shape: f32[8,1], index: 6, kind: output, shape index: {0}]
  %s7 = inlined_call_operand.vmem [shape: f32[8,1], index: 7, kind: output, shape index: {1}]
  %8 = xla_tuple %s6, %s7
  %s9 = sld [smem:[#allocation0]]
  $region58: #{tpu_custom_call.1} parent=0
    _
  %s11 = ssub.s32 1, %s9
  %s12 = scalar_select 0, %s11, %s9
  // Predicated region
  $region2: #{tpu_custom_call.1} parent=0 // pred_check
    _
  $region3: #{tpu_custom_call.1} parent=0 // pred_check_branch
    %14 = sbr.rel (0) target = $region5
  $region4: #{tpu_custom_call.1} parent=0 // pred_region
    _
  $region5: #{tpu_custom_call.1} parent=0 // pred_fallthru
    _
  // Predicated region
  $region6: #{tpu_custom_call.1} parent=0 // pred_check
    _
  $region7: #{tpu_custom_call.1} parent=0 // pred_check_branch
    %16 = sbr.rel (0) target = $region9
  $region8: #{tpu_custom_call.1} parent=0 // pred_region
    _
  $region9: #{tpu_custom_call.1} parent=0 // pred_fallthru
    _
  // Predicated region
  $region10: #{tpu_custom_call.1} parent=0 // pred_check
    _
  $region11: #{tpu_custom_call.1} parent=0 // pred_check_branch
    %18 = sbr.rel (0) target = $region13
  $region12: #{tpu_custom_call.1} parent=0 // pred_region
    _
  $region13: #{tpu_custom_call.1} parent=0 // pred_fallthru
    _
  // Predicated region
  $region14: #{tpu_custom_call.1} parent=0 // pred_check
    _
  $region15: #{tpu_custom_call.1} parent=0 // pred_check_branch
    %20 = sbr.rel (0) target = $region17
  $region16: #{tpu_custom_call.1} parent=0 // pred_region
    _
  $region17: #{tpu_custom_call.1} parent=0 // pred_fallthru
    _
  // Predicated region
  $region18: #{tpu_custom_call.1} parent=0 // pred_check
    _
  $region19: #{tpu_custom_call.1} parent=0 // pred_check_branch
    %22 = sbr.rel (0) target = $region21
  $region20: #{tpu_custom_call.1} parent=0 // pred_region
    _
  $region21: #{tpu_custom_call.1} parent=0 // pred_fallthru
    _
  // Predicated region
  $region22: #{tpu_custom_call.1} parent=0 // pred_check
    _
  $region23: #{tpu_custom_call.1} parent=0 // pred_check_branch
    %24 = sbr.rel (0) target = $region25
  $region24: #{tpu_custom_call.1} parent=0 // pred_region
    _
  $region25: #{tpu_custom_call.1} parent=0 // pred_fallthru
    _
  %p25 = scmp.eq.s32.totalorder 0, 0
  // Predicated region
  $region26: #{tpu_custom_call.1} parent=0 // pred_check
    %p26 = pneg %p25
  $region27: #{tpu_custom_call.1} parent=0 // pred_check_branch
    %28 = sbr.rel (%p26) target = $region29
  $region28: #{tpu_custom_call.1} parent=0 // pred_region
    %vm29 = vcmask 7168
    %30 = vst.msk [vmem:[#allocation2] sm:$0xff] %vm29, 0.0
    %31 = vst.msk [vmem:[#allocation3] sm:$0xff] %vm29, 0.0
  $region29: #{tpu_custom_call.1} parent=0 // pred_fallthru
    _
  %v32 = vld [vmem:[%s0] sm:$0xff]
  %v33 = vld [vmem:[%s1] sm:$0xff]
  %v34 = vld [vmem:[%s1 + $0x8] sm:$0xff]
  %v35 = vld [vmem:[%s1 + $0x10] sm:$0xff]
  %v36 = vld [vmem:[%s1 + $0x18] sm:$0xff]
  %vm37 = vcmask 261120
  %v39 = vsel %vm37, %v32, 0
  %41 = vmatpush.msra.mxu0 0.0
  %42 = vmatpush.msra.mxu0 0.0
  %43 = vmatpush.msra.mxu0 0.0
  %44 = vmatpush.msra.mxu0 0.0
  %45 = vmatpush.msra.mxu0 0.0
  %46 = vmatpush.msra.mxu0 0.0
  %47 = vmatpush.msra.mxu0 0.0
  %48 = vmatpush.msra.mxu0 0.0
  %49 = vmatpush.msra.mxu0 0.0
  %50 = vmatpush.msra.mxu0 0.0
  %51 = vmatpush.msra.mxu0 0.0
  %52 = vmatpush.msra.mxu0 0.0
  %53 = vmatpush.msra.mxu0 %v36
  %54 = vmatpush.msra.mxu0 %v35
  %55 = vmatpush.msra.mxu0 %v34
  %56 = vmatpush.msra.mxu0 %v33
  %57 = vmatmul.f32.gmra.mxu0 %v39
  %v58 = vpop.f32.mrf.mxu0
  %v59 = vadd.f32 0.0, %v58
  %60 = vdwg.mxu0
  %v61 = vld [vmem:[%s2] sm:$0xff]
  %v62 = vld [vmem:[%s3] sm:$0x1]
  %64 = vset.pattern.permute.xlu0 0
  %65 = vperm.xlu0 %64, %v61
  %v66 = vpop.permute.xlu0 %65
  %v69 = vperm.slane %v62, 0
  %v71 = vadd.f32 %v66, %v69
  %v72 = vadd.f32 %v71, %v59
  %v73 = vmin.f32 %v72, 0.0
  %v74 = vmul.f32 %v73, 1.442695
  %v75 = vpow.pop %v74
  %v76 = vld [vmem:[#allocation3] sm:$0xff]
  %vm77 = vcmask 64512
  %v78 = vsel %vm77, %v75, 0.0
  %79 = vadd.xlane.f32.xlu0 %v78
  %v80 = vpop.xlane.xlu0 %79
  %v81 = vadd.f32 %v76, %v80
  %vm82 = vcmask 7168
  %83 = vst.msk [vmem:[#allocation3] sm:$0xff] %vm82, %v81
  %v84 = vld [vmem:[%s4] sm:$0xff]
  %v85 = vld [vmem:[%s5] sm:$0x1]
  %86 = vset.pattern.permute.xlu0 0
  %87 = vperm.xlu0 %86, %v84
  %v88 = vpop.permute.xlu0 %87
  %v89 = vperm.slane %v85, 0
  %vm90 = vcmp.eq.s32.totalorder %v88, %v89
  %s91 = smul.u32 0, 8
  %s92 = smul.u32 0, 8
  %s93 = sadd.s32 %s92, 8
  %p94 = scmp.lt.s32.totalorder %s91, %s93
  %s95 = sadd.s32 %s91, 8
  %p96 = scmp.lt.s32.totalorder %s92, %s95
  %p97 = pnand %p94, %p96
  %p98 = pneg %p97
  // Predicated region
  $region30: #{tpu_custom_call.1} parent=0 // pred_check
    _
  $region31: #{tpu_custom_call.1} parent=0 // pred_check_branch
    %100 = sbr.rel (%p97) target = $region33
  $region32: #{tpu_custom_call.1} parent=0 // pred_region
    %v101 = vlaneseq
    %v102 = vshrl.u32 %v101, 7
    %v103 = vstv %s91
    %v104 = vadd.s32 %v103, %v102
    %v105 = vlaneseq
    %v106 = vand.u32 %v105, 127
    %v107 = vstv %s92
    %v108 = vadd.s32 %v107, %v106
    %vm109 = vcmp.ne.s32.totalorder %v104, %v108
    %vm110 = vmand %vm90, %vm109
    %v111 = vld [vmem:[#allocation2] sm:$0xff]
    %v112 = vsel %vm110, %v75, 0.0
    %v113 = vsel %vm77, %v112, 0.0
    %114 = vadd.xlane.f32.xlu0 %v113
    %v115 = vpop.xlane.xlu0 %114
    %v116 = vadd.f32 %v111, %v115
    %117 = vst.msk [vmem:[#allocation2] sm:$0xff] %vm82, %v116
  $region33: #{tpu_custom_call.1} parent=0 // pred_fallthru
    _
  %p118 = pneg %p98
  // Predicated region
  $region34: #{tpu_custom_call.1} parent=0 // pred_check
    _
  $region35: #{tpu_custom_call.1} parent=0 // pred_check_branch
    %120 = sbr.rel (%p98) target = $region37
  $region36: #{tpu_custom_call.1} parent=0 // pred_region
    %v121 = vld [vmem:[#allocation2] sm:$0xff]
    %v122 = vsel %vm90, %v75, 0.0
    %v123 = vsel %vm77, %v122, 0.0
    %124 = vadd.xlane.f32.xlu0 %v123
    %v125 = vpop.xlane.xlu0 %124
    %v126 = vadd.f32 %v121, %v125
    %127 = vst.msk [vmem:[#allocation2] sm:$0xff] %vm82, %v126
  $region37: #{tpu_custom_call.1} parent=0 // pred_fallthru
    _
  // Predicated region
  $region38: #{tpu_custom_call.1} parent=0 // pred_check
    %p128 = pneg %p25
  $region39: #{tpu_custom_call.1} parent=0 // pred_check_branch
    %130 = sbr.rel (%p128) target = $region41
  $region40: #{tpu_custom_call.1} parent=0 // pred_region
    %v131 = vld [vmem:[#allocation2] sm:$0xff]
    %v132 = vld [vmem:[#allocation3] sm:$0xff]
    %vm133 = vcmp.gt.f32.partialorder %v131, 0.0
    %v134 = vsel %vm133, %v131, 1.0
    %v135 = vsel %vm133, %v132, 1.0
    %v136 = vlog2.pop %v134
    %v137 = vmul.f32 %v136, 0.6931472
    %v138 = vlog2.pop %v135
    %v139 = vmul.f32 %v138, 0.6931472
    %v140 = vsub.f32 %v137, %v139
    %v141 = vsel %vm133, %v140, 0.0
    %142 = vst.msk [vmem:[%s6] sm:$0xff] %vm82, %v141
    %v143 = vsel %vm133, 1, 0
    %v144 = vcvt.s32.f32 %v143
    %145 = vst.msk [vmem:[%s7] sm:$0xff] %vm82, %v144
  $region41: #{tpu_custom_call.1} parent=0 // pred_fallthru
    _
  // Predicated region
  $region42: #{tpu_custom_call.1} parent=0 // pred_check
    _
  $region43: #{tpu_custom_call.1} parent=0 // pred_check_branch
    %147 = sbr.rel (0) target = $region45
  $region44: #{tpu_custom_call.1} parent=0 // pred_region
    _
  $region45: #{tpu_custom_call.1} parent=0 // pred_fallthru
    _
  // Predicated region
  $region46: #{tpu_custom_call.1} parent=0 // pred_check
    _
  $region47: #{tpu_custom_call.1} parent=0 // pred_check_branch
    %149 = sbr.rel (0) target = $region49
  $region48: #{tpu_custom_call.1} parent=0 // pred_region
    _
  $region49: #{tpu_custom_call.1} parent=0 // pred_fallthru
    _
  // Predicated region
  $region50: #{tpu_custom_call.1} parent=0 // pred_check
    _
  $region51: #{tpu_custom_call.1} parent=0 // pred_check_branch
    %151 = sbr.rel (0) target = $region53
  $region52: #{tpu_custom_call.1} parent=0 // pred_region
    _
  $region53: #{tpu_custom_call.1} parent=0 // pred_fallthru
    _
  // Predicated region
  $region54: #{tpu_custom_call.1} parent=0 // pred_check
    _
  $region55: #{tpu_custom_call.1} parent=0 // pred_check_branch
    %153 = sbr.rel (0) target = $region57
  $region56: #{tpu_custom_call.1} parent=0 // pred_region
    _
  $region57: #{tpu_custom_call.1} parent=0 // pred_fallthru
    _

</llo_original>
